<compile_context>
chip_gen: v7x
topology: tpu7x:2x2x1
jax: 0.10.0
libtpu: 0.0.40
codegen_flags: <defaults>
</compile_context>

<pallas_src>
import math
import jax
import jax.numpy as jnp
from jax import lax
from jax.experimental import pallas as pl
from jax.experimental.pallas import tpu as pltpu


# ----------------------------------------------------------------------------- kernel
def cmb_fused_kernel(xi_ref, yi_ref, w0_ref, bias_ref, w2c_ref, wr2_ref, wtab_ref,
                     r_ref, wemb_ref):
    """Fully fused forward: embeddings + all arms + reward head + argmin + arm gather."""
    B, noutput = r_ref.shape
    narms = wr2_ref.shape[1]
    nh_all = w2c_ref.shape[0]            # narms * nhidden
    np_all = narms * noutput             # narms * noutput
    kdim = w0_ref.shape[0]               # 2 * padded cvocab
    cpad = kdim // 2
    wvocab_pad = wtab_ref.shape[0]

    # ---- context-embedding lookup as a one-hot row selector (no XLA gather dispatch).
    # lane layout of the selector matches W0 = block_diag(cemb, cemb) @ [W1_all | Wr1a_t].
    xi = xi_ref[...]                                                     # (B, 2) int32
    lane = lax.broadcasted_iota(jnp.int32, (B, kdim), 1)
    tok = jnp.where(lane < cpad, xi[:, 0:1], xi[:, 1:2] + cpad)
    oh = (lane == tok).astype(jnp.float32)                               # (B, 2*cpad) one-hot x2

    # ---- matmul 1: embeds + W1 (all arms) + Wr1a (reward-context term) in one 256-wide pass.
    xout = (jnp.dot(oh, w0_ref[...], preferred_element_type=jnp.float32)
            + bias_ref[0:1, :2 * nh_all])                                # (B, 2*nh_all)
    hidden_all = xout[:, :nh_all]                                        # cembs@W1_i + b1_i
    h_ctx = xout[:, nh_all:]                                             # cembs@Wr1a + br1 + b2_i@Wr1b

    # ---- matmul 2: [W2_bd | W2_bd@Wr1b_bd] -> pred_all and its reward-head term together.
    out2 = (jnp.dot(hidden_all, w2c_ref[...], preferred_element_type=jnp.float32)
            + bias_ref[1:2, :np_all + nh_all])                           # (B, np_all + nh_all)
    pred_all = out2[:, :np_all]                                          # hidden_i@W2_i + b2_i
    h = jnp.maximum(h_ctx + out2[:, np_all:], 0.0)                       # ReLU(cat([x,pred_i])@Wr1 + br1)

    # ---- matmul 3: per-arm scalar rewards (br2 omitted: shared scalar, argmin-invariant).
    rewards = jnp.dot(h, wr2_ref[...], preferred_element_type=jnp.float32)   # (B, narms)

    # ---- in-kernel argmin with torch.argmin first-index tie-breaking.
    rmin = jnp.min(rewards, axis=1, keepdims=True)
    arm_iota = lax.broadcasted_iota(jnp.int32, (B, narms), 1).astype(jnp.float32)
    a = jnp.min(jnp.where(rewards == rmin, arm_iota, float(narms)),
                axis=1, keepdims=True)                                   # (B, 1), float arm id

    # ---- winning-arm gather: one-hot-weighted sum over the per-arm prediction blocks.
    r = pred_all[:, 0:noutput] * (a == 0.0).astype(jnp.float32)
    for i in range(1, narms):
        r = r + pred_all[:, i * noutput:(i + 1) * noutput] * (a == float(i)).astype(jnp.float32)
    r_ref[...] = r

    # ---- wemb lookup (independent of the arm path) as a one-hot matmul.
    yi = yi_ref[...]                                                     # (B, 1) int32
    wlane = lax.broadcasted_iota(jnp.int32, (B, wvocab_pad), 1)
    ohy = (wlane == yi).astype(jnp.float32)
    wemb_ref[...] = jnp.dot(ohy, wtab_ref[...], preferred_element_type=jnp.float32)


# ----------------------------------------------------------------------------- wrapper
def cmb_forward_inference_test(x_idx, y_idx, packed):
    """CMB.forward(x, y, inference=True, test=True) -> (r, wemb). Single kernel launch."""
    B = x_idx.shape[0]
    noutput = packed["wemb_pad"].shape[1]

    vmem_specs = [pl.BlockSpec(memory_space=pltpu.MemorySpace.VMEM) for _ in range(7)]

    r, wemb = pl.pallas_call(
        cmb_fused_kernel,
        out_shape=(jax.ShapeDtypeStruct((B, noutput), jnp.float32),
                   jax.ShapeDtypeStruct((B, noutput), jnp.float32)),
        in_specs=vmem_specs,
        out_specs=(pl.BlockSpec(memory_space=pltpu.MemorySpace.VMEM),
                   pl.BlockSpec(memory_space=pltpu.MemorySpace.VMEM)),
    )(x_idx.astype(jnp.int32).reshape(B, 2),
      y_idx.astype(jnp.int32).reshape(B, 1),
      packed["W0"], packed["bias"], packed["W2c"], packed["Wr2_bd"], packed["wemb_pad"])
    return r, wemb


# ----------------------------------------------------------------------------- params
def xavier_uniform(key, fan_in, fan_out):
    bound = math.sqrt(6.0 / (fan_in + fan_out))
    return jax.random.uniform(key, (fan_in, fan_out), jnp.float32, -bound, bound)


def init_params(key, narms, ninput, nhidden, noutput, cvocab, wvocab):
    """Raw per-arm parameters, mirroring the torch module layout (xavier weights, zero biases)."""
    ks = jax.random.split(key, 6)
    two_nin = 2 * ninput
    three_nin = 3 * ninput  # torch module implicitly requires noutput == ninput
    W1 = jnp.stack([xavier_uniform(k, two_nin, nhidden) for k in jax.random.split(ks[0], narms)])
    W2 = jnp.stack([xavier_uniform(k, nhidden, noutput) for k in jax.random.split(ks[1], narms)])
    return {
        "W1": W1,                                                        # (narms, 2*ninput, nhidden)
        "b1": jnp.zeros((narms, nhidden), jnp.float32),
        "W2": W2,                                                        # (narms, nhidden, noutput)
        "b2": jnp.zeros((narms, noutput), jnp.float32),
        "Wr1": xavier_uniform(ks[2], three_nin, nhidden),                # input2reward layer 0
        "br1": jnp.zeros((nhidden,), jnp.float32),
        "Wr2": xavier_uniform(ks[3], nhidden, 1),                        # input2reward layer 3
        "br2": jnp.zeros((1,), jnp.float32),
        "cemb": jax.random.normal(ks[4], (cvocab, ninput), jnp.float32), # "pretrained" cembs
        "wemb": jax.random.normal(ks[5], (wvocab, noutput), jnp.float32),# "pretrained" wembs
    }


def _block_diag(blocks):
    rows = sum(b.shape[0] for b in blocks)
    cols = sum(b.shape[1] for b in blocks)
    out = jnp.zeros((rows, cols), blocks[0].dtype)
    ro = co = 0
    for b in blocks:
        out = out.at[ro:ro + b.shape[0], co:co + b.shape[1]].set(b)
        ro += b.shape[0]
        co += b.shape[1]
    return out


def _pad_rows(x, mult=8):
    pad = (-x.shape[0]) % mult
    if pad == 0:
        return x
    return jnp.concatenate([x, jnp.zeros((pad,) + x.shape[1:], x.dtype)], axis=0)


def pack_params(p):
    """One-time packing: lane-pack arms + fold embeddings / W2 into the matmul chain."""
    narms, two_nin, nhidden = p["W1"].shape
    noutput = p["W2"].shape[2]

    W1_all = p["W1"].transpose(1, 0, 2).reshape(two_nin, narms * nhidden)
    b1_all = p["b1"].reshape(1, narms * nhidden)
    W2_bd = _block_diag([p["W2"][i] for i in range(narms)])              # (narms*nhidden, narms*noutput)
    b2_all = p["b2"].reshape(1, narms * noutput)
    Wr1a = p["Wr1"][:two_nin]                                            # context part  (2*ninput, nhidden)
    Wr1b = p["Wr1"][two_nin:]                                            # prediction part (noutput, nhidden)
    Wr1a_t = jnp.tile(Wr1a, (1, narms))                                  # (2*ninput, narms*nhidden)
    Wr1b_bd = _block_diag([Wr1b] * narms)                                # (narms*noutput, narms*nhidden)
    br1_t = jnp.tile(p["br1"].reshape(1, nhidden), (1, narms))

    # Fold the cemb lookup + [W1_all | Wr1a_t] into one RHS (rows padded to a sublane multiple;
    # the padded rows are all-zero and can never be selected by the in-kernel one-hot).
    cemb_pad = _pad_rows(p["cemb"])                                      # (pad8(cvocab), ninput)
    cemb_bd = _block_diag([cemb_pad, cemb_pad])                          # (2*pad, 2*ninput)
    Wx = jnp.concatenate([W1_all, Wr1a_t], axis=1)                       # (2*ninput, 2*narms*nhidden)
    W0 = cemb_bd @ Wx                                                    # (2*pad, 2*narms*nhidden)

    # Fold W2 through the reward head's prediction branch: pred@Wr1b = hidden@(W2@Wr1b) + b2@Wr1b.
    W2r = W2_bd @ Wr1b_bd                                                # (narms*nhidden, narms*nhidden)
    b2r = b2_all @ Wr1b_bd                                               # (1, narms*nhidden)
    W2c = jnp.concatenate([W2_bd, W2r], axis=1)                          # (narms*nhidden, narms*(noutput+nhidden))

    wA = 2 * narms * nhidden
    wB = narms * (noutput + nhidden)
    W = max(wA, wB)
    biasA = jnp.zeros((1, W), jnp.float32).at[:, :wA].set(
        jnp.concatenate([b1_all, br1_t + b2r], axis=1))                  # row 0: after matmul 1
    biasB = jnp.zeros((1, W), jnp.float32).at[:, :wB].set(
        jnp.concatenate([b2_all, jnp.zeros_like(br1_t)], axis=1))        # row 1: after matmul 2
    bias = jnp.concatenate([biasA, biasB], axis=0)                       # (2, W)

    Wr2_bd = _block_diag([p["Wr2"]] * narms)                             # (narms*nhidden, narms)
    # br2 dropped: input2reward is shared across arms, so br2 shifts every arm's reward
    # equally and cannot change the argmin; raw rewards are not part of the output.

    return {"W0": W0, "bias": bias, "W2c": W2c, "Wr2_bd": Wr2_bd,
            "wemb_pad": _pad_rows(p["wemb"])}


# ----------------------------------------------------------------------------- reference
def reference(x_idx, y_idx, p):
    """Pure-JAX re-implementation of the torch forward (test+inference path), per-arm loop."""
    B = x_idx.shape[0]
    cembs = p["cemb"][x_idx.reshape(B, -1)].reshape(B, -1)
    wemb = p["wemb"][y_idx]
    narms = p["W1"].shape[0]
    preds, rewards = [], []
    for i in range(narms):
        h = cembs @ p["W1"][i] + p["b1"][i]
        pred = h @ p["W2"][i] + p["b2"][i]
        z = jnp.concatenate([cembs, pred], axis=1)
        hr = jnp.maximum(z @ p["Wr1"] + p["br1"], 0.0)
        rw = hr @ p["Wr2"] + p["br2"]
        preds.append(pred)
        rewards.append(rw)
    rewards = jnp.concatenate(rewards, axis=1)                           # (B, narms)
    a = jnp.argmin(rewards, axis=1)
    preds = jnp.stack(preds, axis=1)                                     # (B, narms, noutput)
    return preds[jnp.arange(B), a, :], wemb

# TODO(synk): the training branch (self.pool replay, MSE/sqrt losses over a Python list) and the
# stochastic Agent (Categorical sampling, epsilon-greedy) are host-side control flow / RNG
# sampling and are left out of the kernel.


if __name__ == "__main__":
    narms, ninput, nhidden, noutput = 4, 32, 32, 32   # noutput must equal ninput (3*ninput reward head)
    B, cvocab, wvocab = 8, 50, 60

    key = jax.random.PRNGKey(0)
    kp, kx, ky = jax.random.split(key, 3)
    raw = init_params(kp, narms, ninput, nhidden, noutput, cvocab, wvocab)
    packed = pack_params(raw)

    x = jax.random.randint(kx, (B, 2), 0, cvocab, dtype=jnp.int32)       # two context tokens -> (B, 2*ninput)
    y = jax.random.randint(ky, (B,), 0, wvocab, dtype=jnp.int32)

    fwd = jax.jit(cmb_forward_inference_test)
    r, wemb = fwd(x, y, packed)
    jax.block_until_ready(r)
    jax.block_until_ready(wemb)

    r_ref, wemb_ref = reference(x, y, raw)
    assert r.shape == (B, noutput) and wemb.shape == (B, noutput)
    assert jnp.allclose(r, r_ref, atol=1e-4, rtol=1e-4), "pred mismatch vs reference"
    assert jnp.allclose(wemb, wemb_ref, atol=1e-4, rtol=1e-4), "wemb mismatch vs reference"

    print("KERNEL_OK")
</pallas_src>

<mosaic_0001>
module attributes {stable_mosaic.version = 11 : i64} {
  func.func @cmb_fused_kernel(%arg0: memref<8x2xi32, #tpu.memory_space<vmem>>, %arg1: memref<8x1xi32, #tpu.memory_space<vmem>>, %arg2: memref<112x256xf32, #tpu.memory_space<vmem>>, %arg3: memref<2x256xf32, #tpu.memory_space<vmem>>, %arg4: memref<128x256xf32, #tpu.memory_space<vmem>>, %arg5: memref<128x4xf32, #tpu.memory_space<vmem>>, %arg6: memref<64x32xf32, #tpu.memory_space<vmem>>, %arg7: memref<8x32xf32, #tpu.memory_space<vmem>>, %arg8: memref<8x32xf32, #tpu.memory_space<vmem>>) attributes {dimension_semantics = [], scalar_prefetch = 0 : i64, scratch_operands = 0 : i64, tpu.core_type = #tpu.core_type<tc>} {
    %c0 = arith.constant 0 : index
    %c0_0 = arith.constant 0 : index
    %0 = vector.load %arg0[%c0, %c0_0] : memref<8x2xi32, #tpu.memory_space<vmem>>, vector<8x2xi32>
    %1 = tpu.iota {dimensions = array<i32: 1>} : vector<8x112xi32>
    %c56_i32 = arith.constant 56 : i32
    %2 = vector.broadcast %c56_i32 : i32 to vector<8x112xi32>
    %3 = arith.cmpi slt, %1, %2 : vector<8x112xi32>
    %4 = vector.extract_strided_slice %0 {offsets = [0, 0], sizes = [8, 1], strides = [1, 1]} : vector<8x2xi32> to vector<8x1xi32>
    %5 = vector.extract_strided_slice %0 {offsets = [0, 1], sizes = [8, 1], strides = [1, 1]} : vector<8x2xi32> to vector<8x1xi32>
    %c56_i32_1 = arith.constant 56 : i32
    %6 = vector.broadcast %c56_i32_1 : i32 to vector<8x1xi32>
    %7 = arith.addi %5, %6 : vector<8x1xi32>
    %8 = vector.shape_cast %4 : vector<8x1xi32> to vector<8x1xi32>
    %9 = vector.broadcast %8 : vector<8x1xi32> to vector<8x112xi32>
    %10 = vector.shape_cast %7 : vector<8x1xi32> to vector<8x1xi32>
    %11 = vector.broadcast %10 : vector<8x1xi32> to vector<8x112xi32>
    %12 = arith.select %3, %9, %11 : vector<8x112xi1>, vector<8x112xi32>
    %13 = arith.cmpi eq, %1, %12 : vector<8x112xi32>
    %14 = arith.extui %13 : vector<8x112xi1> to vector<8x112xi32>
    %15 = arith.sitofp %14 : vector<8x112xi32> to vector<8x112xf32>
    %c0_2 = arith.constant 0 : index
    %c0_3 = arith.constant 0 : index
    %16 = vector.load %arg2[%c0_2, %c0_3] : memref<112x256xf32, #tpu.memory_space<vmem>>, vector<112x256xf32>
    %cst = arith.constant dense<0.000000e+00> : vector<8x256xf32>
    %17 = tpu.matmul %15, %16, %cst {dimension_numbers = #tpu.dot_dimension_numbers<[1], [0], [0], [1], [0, 0, 1, 1], [], []>} : vector<8x112xf32>, vector<112x256xf32>, vector<8x256xf32> -> vector<8x256xf32>
    %c0_4 = arith.constant 0 : index
    %c0_5 = arith.constant 0 : index
    %18 = vector.load %arg3[%c0_4, %c0_5] : memref<2x256xf32, #tpu.memory_space<vmem>>, vector<1x256xf32>
    %19 = vector.broadcast %18 : vector<1x256xf32> to vector<8x256xf32>
    %20 = arith.addf %17, %19 : vector<8x256xf32>
    %21 = vector.extract_strided_slice %20 {offsets = [0, 0], sizes = [8, 128], strides = [1, 1]} : vector<8x256xf32> to vector<8x128xf32>
    %22 = vector.extract_strided_slice %20 {offsets = [0, 128], sizes = [8, 128], strides = [1, 1]} : vector<8x256xf32> to vector<8x128xf32>
    %c0_6 = arith.constant 0 : index
    %c0_7 = arith.constant 0 : index
    %23 = vector.load %arg4[%c0_6, %c0_7] : memref<128x256xf32, #tpu.memory_space<vmem>>, vector<128x256xf32>
    %cst_8 = arith.constant dense<0.000000e+00> : vector<8x256xf32>
    %24 = tpu.matmul %21, %23, %cst_8 {dimension_numbers = #tpu.dot_dimension_numbers<[1], [0], [0], [1], [0, 0, 1, 1], [], []>} : vector<8x128xf32>, vector<128x256xf32>, vector<8x256xf32> -> vector<8x256xf32>
    %c1 = arith.constant 1 : index
    %c0_9 = arith.constant 0 : index
    %25 = vector.load %arg3[%c1, %c0_9] : memref<2x256xf32, #tpu.memory_space<vmem>>, vector<1x256xf32>
    %26 = vector.broadcast %25 : vector<1x256xf32> to vector<8x256xf32>
    %27 = arith.addf %24, %26 : vector<8x256xf32>
    %28 = vector.extract_strided_slice %27 {offsets = [0, 0], sizes = [8, 128], strides = [1, 1]} : vector<8x256xf32> to vector<8x128xf32>
    %29 = vector.extract_strided_slice %27 {offsets = [0, 128], sizes = [8, 128], strides = [1, 1]} : vector<8x256xf32> to vector<8x128xf32>
    %30 = arith.addf %22, %29 : vector<8x128xf32>
    %cst_10 = arith.constant 0.000000e+00 : f32
    %31 = vector.broadcast %cst_10 : f32 to vector<8x128xf32>
    %32 = arith.maximumf %30, %31 : vector<8x128xf32>
    %c0_11 = arith.constant 0 : index
    %c0_12 = arith.constant 0 : index
    %33 = vector.load %arg5[%c0_11, %c0_12] : memref<128x4xf32, #tpu.memory_space<vmem>>, vector<128x4xf32>
    %cst_13 = arith.constant dense<0.000000e+00> : vector<8x4xf32>
    %34 = tpu.matmul %32, %33, %cst_13 {dimension_numbers = #tpu.dot_dimension_numbers<[1], [0], [0], [1], [0, 0, 1, 1], [], []>} : vector<8x128xf32>, vector<128x4xf32>, vector<8x4xf32> -> vector<8x4xf32>
    %cst_14 = arith.constant dense<0x7F800000> : vector<8xf32>
    %35 = vector.multi_reduction <minimumf>, %34, %cst_14 [1] : vector<8x4xf32> to vector<8xf32>
    %36 = vector.shape_cast %35 : vector<8xf32> to vector<8x1xf32>
    %37 = tpu.iota {dimensions = array<i32: 1>} : vector<8x4xi32>
    %38 = arith.sitofp %37 : vector<8x4xi32> to vector<8x4xf32>
    %39 = vector.broadcast %36 : vector<8x1xf32> to vector<8x4xf32>
    %40 = arith.cmpf oeq, %34, %39 : vector<8x4xf32>
    %cst_15 = arith.constant 4.000000e+00 : f32
    %41 = vector.broadcast %cst_15 : f32 to vector<8x4xf32>
    %42 = arith.select %40, %38, %41 : vector<8x4xi1>, vector<8x4xf32>
    %cst_16 = arith.constant dense<0x7F800000> : vector<8xf32>
    %43 = vector.multi_reduction <minimumf>, %42, %cst_16 [1] : vector<8x4xf32> to vector<8xf32>
    %44 = vector.shape_cast %43 : vector<8xf32> to vector<8x1xf32>
    %45 = vector.extract_strided_slice %28 {offsets = [0, 0], sizes = [8, 32], strides = [1, 1]} : vector<8x128xf32> to vector<8x32xf32>
    %cst_17 = arith.constant 0.000000e+00 : f32
    %46 = vector.broadcast %cst_17 : f32 to vector<8x1xf32>
    %47 = arith.cmpf oeq, %44, %46 : vector<8x1xf32>
    %48 = arith.extui %47 : vector<8x1xi1> to vector<8x1xi32>
    %49 = arith.sitofp %48 : vector<8x1xi32> to vector<8x1xf32>
    %50 = vector.broadcast %49 : vector<8x1xf32> to vector<8x32xf32>
    %51 = arith.mulf %45, %50 : vector<8x32xf32>
    %52 = vector.extract_strided_slice %28 {offsets = [0, 32], sizes = [8, 32], strides = [1, 1]} : vector<8x128xf32> to vector<8x32xf32>
    %cst_18 = arith.constant 1.000000e+00 : f32
    %53 = vector.broadcast %cst_18 : f32 to vector<8x1xf32>
    %54 = arith.cmpf oeq, %44, %53 : vector<8x1xf32>
    %55 = arith.extui %54 : vector<8x1xi1> to vector<8x1xi32>
    %56 = arith.sitofp %55 : vector<8x1xi32> to vector<8x1xf32>
    %57 = vector.broadcast %56 : vector<8x1xf32> to vector<8x32xf32>
    %58 = arith.mulf %52, %57 : vector<8x32xf32>
    %59 = arith.addf %51, %58 : vector<8x32xf32>
    %60 = vector.extract_strided_slice %28 {offsets = [0, 64], sizes = [8, 32], strides = [1, 1]} : vector<8x128xf32> to vector<8x32xf32>
    %cst_19 = arith.constant 2.000000e+00 : f32
    %61 = vector.broadcast %cst_19 : f32 to vector<8x1xf32>
    %62 = arith.cmpf oeq, %44, %61 : vector<8x1xf32>
    %63 = arith.extui %62 : vector<8x1xi1> to vector<8x1xi32>
    %64 = arith.sitofp %63 : vector<8x1xi32> to vector<8x1xf32>
    %65 = vector.broadcast %64 : vector<8x1xf32> to vector<8x32xf32>
    %66 = arith.mulf %60, %65 : vector<8x32xf32>
    %67 = arith.addf %59, %66 : vector<8x32xf32>
    %68 = vector.extract_strided_slice %28 {offsets = [0, 96], sizes = [8, 32], strides = [1, 1]} : vector<8x128xf32> to vector<8x32xf32>
    %cst_20 = arith.constant 3.000000e+00 : f32
    %69 = vector.broadcast %cst_20 : f32 to vector<8x1xf32>
    %70 = arith.cmpf oeq, %44, %69 : vector<8x1xf32>
    %71 = arith.extui %70 : vector<8x1xi1> to vector<8x1xi32>
    %72 = arith.sitofp %71 : vector<8x1xi32> to vector<8x1xf32>
    %73 = vector.broadcast %72 : vector<8x1xf32> to vector<8x32xf32>
    %74 = arith.mulf %68, %73 : vector<8x32xf32>
    %75 = arith.addf %67, %74 : vector<8x32xf32>
    %c0_21 = arith.constant 0 : index
    %c0_22 = arith.constant 0 : index
    %76 = vector.load %arg7[%c0_21, %c0_22] : memref<8x32xf32, #tpu.memory_space<vmem>>, vector<8x32xf32>
    tpu.vector_store %arg7[%c0_21, %c0_22], %75 {strides = array<i32>} : memref<8x32xf32, #tpu.memory_space<vmem>>, vector<8x32xf32>,
    %c0_23 = arith.constant 0 : index
    %c0_24 = arith.constant 0 : index
    %77 = vector.load %arg1[%c0_23, %c0_24] : memref<8x1xi32, #tpu.memory_space<vmem>>, vector<8x1xi32>
    %78 = tpu.iota {dimensions = array<i32: 1>} : vector<8x64xi32>
    %79 = vector.broadcast %77 : vector<8x1xi32> to vector<8x64xi32>
    %80 = arith.cmpi eq, %78, %79 : vector<8x64xi32>
    %81 = arith.extui %80 : vector<8x64xi1> to vector<8x64xi32>
    %82 = arith.sitofp %81 : vector<8x64xi32> to vector<8x64xf32>
    %c0_25 = arith.constant 0 : index
    %c0_26 = arith.constant 0 : index
    %83 = vector.load %arg6[%c0_25, %c0_26] : memref<64x32xf32, #tpu.memory_space<vmem>>, vector<64x32xf32>
    %cst_27 = arith.constant dense<0.000000e+00> : vector<8x32xf32>
    %84 = tpu.matmul %82, %83, %cst_27 {dimension_numbers = #tpu.dot_dimension_numbers<[1], [0], [0], [1], [0, 0, 1, 1], [], []>} : vector<8x64xf32>, vector<64x32xf32>, vector<8x32xf32> -> vector<8x32xf32>
    %c0_28 = arith.constant 0 : index
    %c0_29 = arith.constant 0 : index
    %85 = vector.load %arg8[%c0_28, %c0_29] : memref<8x32xf32, #tpu.memory_space<vmem>>, vector<8x32xf32>
    tpu.vector_store %arg8[%c0_28, %c0_29], %84 {strides = array<i32>} : memref<8x32xf32, #tpu.memory_space<vmem>>, vector<8x32xf32>,
    return
  }
}

</mosaic_0001>

<llo_original>
// kernel: cmb_forward_inference_test.1
$region0: #{cmb_forward_inference_test.1}
  #allocation0 [shape = 'u32[]', space=smem, size = 0x4, offset = 0x4, fixed_abs, tag = 'smem constant byte address 0x4 - core index']
  #allocation1 [shape = 'u32[144,128]{1,0:T(1,128)}', space=vmem, size = 0x12000, scoped, tag = 'internal scratch']
  %s0 = inlined_call_operand.vmem [shape: s32[8,2], index: 0, kind: input, shape index: {}]
  %s1 = inlined_call_operand.vmem [shape: s32[8,1], index: 1, kind: input, shape index: {}]
  %s2 = inlined_call_operand.hbm [shape: f32[112,256], index: 2, kind: input, shape index: {}]
  %s3 = inlined_call_operand.vmem [shape: f32[2,256], index: 3, kind: input, shape index: {}]
  %s4 = inlined_call_operand.vmem [shape: f32[128,256], index: 4, kind: input, shape index: {}]
  %s5 = inlined_call_operand.vmem [shape: f32[128,4], index: 5, kind: input, shape index: {}]
  %s6 = inlined_call_operand.vmem [shape: f32[64,32], index: 6, kind: input, shape index: {}]
  %s7 = inlined_call_operand.hbm [shape: f32[8,32], index: 7, kind: output, shape index: {0}]
  %s8 = inlined_call_operand.hbm [shape: f32[8,32], index: 8, kind: output, shape index: {1}]
  %9 = xla_tuple %s7, %s8
  %s10 = sld [smem:[#allocation0]]
  $region50: #{cmb_forward_inference_test.1} parent=0
    _
  %s12 = ssub.s32 1, %s10
  %s13 = scalar_select 0, %s12, %s10
  $region1: #{cmb_forward_inference_test.1} parent=0
    #allocation2 [shape = 'u8[114688]{0}', space=vmem, size = 0x1c000, scoped, tag = 'input window, operand 2, single buffered']
    #allocation3 [shape = 's32[1]{0}', space=sflag, size = 0x4, scoped, tag = 'scoped memory for cmb_forward_inference_test.1']
    #allocation4 [shape = 's32[1]{0}', space=sflag, size = 0x4, scoped, tag = 'scoped memory for cmb_forward_inference_test.1']
    #allocation5 [shape = 'u8[4096]{0}', space=vmem, size = 0x1000, scoped, tag = 'output window, operand 0, single buffered']
    #allocation6 [shape = 'u8[4096]{0}', space=vmem, size = 0x1000, scoped, tag = 'output window, operand 1, single buffered']
    #allocation7 [shape = 's32[1]{0}', space=sflag, size = 0x4, scoped, tag = 'scoped memory for cmb_forward_inference_test.1']
    %14 = vsyncpa [#allocation3], 0
    %15 = vsyncpa [#allocation4], 0
    %16 = vsyncpa [#allocation7], 0
    // Predicated region
    $region2: #{cmb_forward_inference_test.1} parent=1 // pred_check
      _
    $region3: #{cmb_forward_inference_test.1} parent=1 // pred_check_branch
      %18 = sbr.rel (0) target = $region5
    $region4: #{cmb_forward_inference_test.1} parent=1 // pred_region
      _
    $region5: #{cmb_forward_inference_test.1} parent=1 // pred_fallthru
      _
    // Predicated region
    $region6: #{cmb_forward_inference_test.1} parent=1 // pred_check
      _
    $region7: #{cmb_forward_inference_test.1} parent=1 // pred_check_branch
      %20 = sbr.rel (0) target = $region9
    $region8: #{cmb_forward_inference_test.1} parent=1 // pred_region
      _
    $region9: #{cmb_forward_inference_test.1} parent=1 // pred_fallthru
      _
    // Predicated region
    $region10: #{cmb_forward_inference_test.1} parent=1 // pred_check
      _
    $region11: #{cmb_forward_inference_test.1} parent=1 // pred_check_branch
      %22 = sbr.rel (0) target = $region13
    $region12: #{cmb_forward_inference_test.1} parent=1 // pred_region
      %s24 = ssub.s32 3584, 3584
      %25 = vsyncadd [#allocation3], %s24
      %s26 = sshll.u32 [#allocation2], 4
      %s27 = int_to_ptr.vmem [resolvable:$true] %s26
      %32 = dma.hbm_to_vmem [thread:$0]  %s2, 3584, %s27, [#allocation3], 256, 256, 16
    $region13: #{cmb_forward_inference_test.1} parent=1 // pred_fallthru
      _
    // Predicated region
    $region14: #{cmb_forward_inference_test.1} parent=1 // pred_check
      _
    $region15: #{cmb_forward_inference_test.1} parent=1 // pred_check_branch
      %34 = sbr.rel (0) target = $region17
    $region16: #{cmb_forward_inference_test.1} parent=1 // pred_region
      _
    $region17: #{cmb_forward_inference_test.1} parent=1 // pred_fallthru
      _
    // Predicated region
    $region18: #{cmb_forward_inference_test.1} parent=1 // pred_check
      _
    $region19: #{cmb_forward_inference_test.1} parent=1 // pred_check_branch
      %36 = sbr.rel (0) target = $region21
    $region20: #{cmb_forward_inference_test.1} parent=1 // pred_region
      _
    $region21: #{cmb_forward_inference_test.1} parent=1 // pred_fallthru
      _
    // Predicated region
    $region22: #{cmb_forward_inference_test.1} parent=1 // pred_check
      _
    $region23: #{cmb_forward_inference_test.1} parent=1 // pred_check_branch
      %38 = sbr.rel (0) target = $region25
    $region24: #{cmb_forward_inference_test.1} parent=1 // pred_region
      _
    $region25: #{cmb_forward_inference_test.1} parent=1 // pred_fallthru
      _
    // Predicated region
    $region26: #{cmb_forward_inference_test.1} parent=1 // pred_check
      _
    $region27: #{cmb_forward_inference_test.1} parent=1 // pred_check_branch
      %40 = sbr.rel (0) target = $region29
    $region28: #{cmb_forward_inference_test.1} parent=1 // pred_region
      _
    $region29: #{cmb_forward_inference_test.1} parent=1 // pred_fallthru
      _
    // Predicated region
    $region30: #{cmb_forward_inference_test.1} parent=1 // pred_check
      _
    $region31: #{cmb_forward_inference_test.1} parent=1 // pred_check_branch
      %42 = sbr.rel (0) target = $region33
    $region32: #{cmb_forward_inference_test.1} parent=1 // pred_region
      %43 = dma.done [#allocation3], 3584
    $region33: #{cmb_forward_inference_test.1} parent=1 // pred_fallthru
      _
    %v44 = vld [vmem:[%s0] sm:$0xff]
    %v45 = vlaneseq
    %v46 = vand.u32 %v45, 127
    %vm47 = vcmp.lt.s32.totalorder %v46, 56
    %v48 = vadd.s32 %v44, 56
    %49 = vset.pattern.permute.xlu0 0
    %50 = vperm.xlu0 %49, %v44
    %v51 = vpop.permute.xlu0 %50
    %52 = vset.pattern.permute.xlu0 1
    %53 = vperm.xlu0 %52, %v48
    %v54 = vpop.permute.xlu0 %53
    %v55 = vsel %vm47, %v51, %v54
    %vm56 = vcmp.eq.s32.totalorder %v46, %v55
    %v57 = vsel %vm56, 1, 0
    %v58 = vcvt.s32.f32 %v57
    %v59 = vld [vmem:[#allocation2] sm:$0xff]
    %v60 = vld [vmem:[#allocation2 + $0x8] sm:$0xff]
    %v61 = vld [vmem:[#allocation2 + $0x10] sm:$0xff]
    %v62 = vld [vmem:[#allocation2 + $0x18] sm:$0xff]
    %v63 = vld [vmem:[#allocation2 + $0x20] sm:$0xff]
    %v64 = vld [vmem:[#allocation2 + $0x28] sm:$0xff]
    %v65 = vld [vmem:[#allocation2 + $0x30] sm:$0xff]
    %v66 = vld [vmem:[#allocation2 + $0x38] sm:$0xff]
    %v67 = vld [vmem:[#allocation2 + $0x40] sm:$0xff]
    %v68 = vld [vmem:[#allocation2 + $0x48] sm:$0xff]
    %v69 = vld [vmem:[#allocation2 + $0x50] sm:$0xff]
    %v70 = vld [vmem:[#allocation2 + $0x58] sm:$0xff]
    %v71 = vld [vmem:[#allocation2 + $0x60] sm:$0xff]
    %v72 = vld [vmem:[#allocation2 + $0x68] sm:$0xff]
    %v73 = vld [vmem:[#allocation2 + $0x70] sm:$0xff]
    %v74 = vld [vmem:[#allocation2 + $0x78] sm:$0xff]
    %v75 = vld [vmem:[#allocation2 + $0x80] sm:$0xff]
    %v76 = vld [vmem:[#allocation2 + $0x88] sm:$0xff]
    %v77 = vld [vmem:[#allocation2 + $0x90] sm:$0xff]
    %v78 = vld [vmem:[#allocation2 + $0x98] sm:$0xff]
    %v79 = vld [vmem:[#allocation2 + $0xa0] sm:$0xff]
    %v80 = vld [vmem:[#allocation2 + $0xa8] sm:$0xff]
    %v81 = vld [vmem:[#allocation2 + $0xb0] sm:$0xff]
    %v82 = vld [vmem:[#allocation2 + $0xb8] sm:$0xff]
    %v83 = vld [vmem:[#allocation2 + $0xc0] sm:$0xff]
    %v84 = vld [vmem:[#allocation2 + $0xc8] sm:$0xff]
    %v85 = vld [vmem:[#allocation2 + $0xd0] sm:$0xff]
    %v86 = vld [vmem:[#allocation2 + $0xd8] sm:$0xff]
    %v87 = vld [vmem:[%s3] ss:$2 sm:$0x3]
    %v89 = vlaneseq
    %v90 = vshrl.u32 %v89, 7
    %v91 = vsub.s32 0, %v90
    %v92 = vrot.slane %v87, %v91
    %v93 = vlaneseq
    %v94 = vshrl.u32 %v93, 7
    %v95 = vsub.s32 1, %v94
    %v96 = vrot.slane %v87, %v95
    %vm99 = vcmask 916480
    %v101 = vsel %vm99, %v58, 0
    %103 = vmatprep.subr.mxu0 %v60
    %104 = vmatpush1.msra.mxu0 %v59
    %105 = vmatprep.subr.mxu0 %v62
    %106 = vmatpush1.msra.mxu0 %v61
    %107 = vmatprep.subr.mxu0 %v64
    %108 = vmatpush1.msra.mxu0 %v63
    %109 = vmatprep.subr.mxu0 %v66
    %110 = vmatpush1.msra.mxu0 %v65
    %111 = vmatprep.subr.mxu0 %v68
    %112 = vmatpush1.msra.mxu0 %v67
    %113 = vmatprep.subr.mxu0 %v70
    %114 = vmatpush1.msra.mxu0 %v69
    %115 = vmatprep.subr.mxu0 %v72
    %116 = vmatpush1.msra.mxu0 %v71
    %117 = vmatprep.subr.mxu0 %v74
    %118 = vmatpush1.msra.mxu0 %v73
    %119 = vmatprep.subr.mxu0 %v76
    %120 = vmatpush1.msra.mxu0 %v75
    %121 = vmatprep.subr.mxu0 %v78
    %122 = vmatpush1.msra.mxu0 %v77
    %123 = vmatprep.subr.mxu0 %v80
    %124 = vmatpush1.msra.mxu0 %v79
    %125 = vmatprep.subr.mxu0 %v82
    %126 = vmatpush1.msra.mxu0 %v81
    %127 = vmatprep.subr.mxu0 %v84
    %128 = vmatpush1.msra.mxu0 %v83
    %129 = vmatprep.subr.mxu0 %v86
    %130 = vmatpush1.msra.mxu0 %v85
    %131 = vmatprep.subr.mxu0 0.0
    %132 = vmatpush1.msra.mxu0 0.0
    %133 = vmatprep.subr.mxu0 0.0
    %134 = vmatpush1.msra.mxu0 0.0
    %135 = vmatprep.subr.mxu0 0.0
    %136 = vmatpush1.msra.mxu0 0.0
    %137 = vmatprep.subr.mxu0 0.0
    %138 = vmatpush1.msra.mxu0 0.0
    %139 = vmatprep.subr.mxu0 0.0
    %140 = vmatpush1.msra.mxu0 0.0
    %141 = vmatprep.subr.mxu0 0.0
    %142 = vmatpush1.msra.mxu0 0.0
    %143 = vmatprep.subr.mxu0 0.0
    %144 = vmatpush1.msra.mxu0 0.0
    %145 = vmatprep.subr.mxu0 0.0
    %146 = vmatpush1.msra.mxu0 0.0
    %147 = vmatprep.subr.mxu0 0.0
    %148 = vmatpush1.msra.mxu0 0.0
    %149 = vmatprep.subr.mxu0 0.0
    %150 = vmatpush1.msra.mxu0 0.0
    %151 = vmatprep.subr.mxu0 0.0
    %152 = vmatpush1.msra.mxu0 0.0
    %153 = vmatprep.subr.mxu0 0.0
    %154 = vmatpush1.msra.mxu0 0.0
    %155 = vmatprep.subr.mxu0 0.0
    %156 = vmatpush1.msra.mxu0 0.0
    %157 = vmatprep.subr.mxu0 0.0
    %158 = vmatpush1.msra.mxu0 0.0
    %159 = vmatprep.subr.mxu0 0.0
    %160 = vmatpush1.msra.mxu0 0.0
    %161 = vmatprep.subr.mxu0 0.0
    %162 = vmatpush1.msra.mxu0 0.0
    %163 = vmatprep.subr.mxu0 0.0
    %164 = vmatpush1.msra.mxu0 0.0
    %165 = vmatprep.subr.mxu0 0.0
    %166 = vmatpush1.msra.mxu0 0.0
    %167 = vmatprep.mubr.f32.mxu0 0.0
    %168 = vmatmul.mubr.f32.gmra.mrb[0].mxu0 %v101
    %v169 = vpop.f32.mrb[0].mxu0
    %v170 = vadd.f32 %v92, %v169
    %v171 = vpop.f32.mrb[0].mxu0
    %v172 = vadd.f32 %v96, %v171
    %173 = vdwg.mxu0
    %v174 = vld [vmem:[%s4] sm:$0xff]
    %v175 = vld [vmem:[%s4 + $0x8] sm:$0xff]
    %v176 = vld [vmem:[%s4 + $0x10] sm:$0xff]
    %v177 = vld [vmem:[%s4 + $0x18] sm:$0xff]
    %v178 = vld [vmem:[%s4 + $0x20] sm:$0xff]
    %v179 = vld [vmem:[%s4 + $0x28] sm:$0xff]
    %v180 = vld [vmem:[%s4 + $0x30] sm:$0xff]
    %v181 = vld [vmem:[%s4 + $0x38] sm:$0xff]
    %v182 = vld [vmem:[%s4 + $0x40] sm:$0xff]
    %v183 = vld [vmem:[%s4 + $0x48] sm:$0xff]
    %v184 = vld [vmem:[%s4 + $0x50] sm:$0xff]
    %v185 = vld [vmem:[%s4 + $0x58] sm:$0xff]
    %v186 = vld [vmem:[%s4 + $0x60] sm:$0xff]
    %v187 = vld [vmem:[%s4 + $0x68] sm:$0xff]
    %v188 = vld [vmem:[%s4 + $0x70] sm:$0xff]
    %v189 = vld [vmem:[%s4 + $0x78] sm:$0xff]
    %v190 = vld [vmem:[%s4 + $0x80] sm:$0xff]
    %v191 = vld [vmem:[%s4 + $0x88] sm:$0xff]
    %v192 = vld [vmem:[%s4 + $0x90] sm:$0xff]
    %v193 = vld [vmem:[%s4 + $0x98] sm:$0xff]
    %v194 = vld [vmem:[%s4 + $0xa0] sm:$0xff]
    %v195 = vld [vmem:[%s4 + $0xa8] sm:$0xff]
    %v196 = vld [vmem:[%s4 + $0xb0] sm:$0xff]
    %v197 = vld [vmem:[%s4 + $0xb8] sm:$0xff]
    %v198 = vld [vmem:[%s4 + $0xc0] sm:$0xff]
    %v199 = vld [vmem:[%s4 + $0xc8] sm:$0xff]
    %v200 = vld [vmem:[%s4 + $0xd0] sm:$0xff]
    %v201 = vld [vmem:[%s4 + $0xd8] sm:$0xff]
    %v202 = vld [vmem:[%s4 + $0xe0] sm:$0xff]
    %v203 = vld [vmem:[%s4 + $0xe8] sm:$0xff]
    %v204 = vld [vmem:[%s4 + $0xf0] sm:$0xff]
    %v205 = vld [vmem:[%s4 + $0xf8] sm:$0xff]
    %s206 = scalar_lea.vmem %s3, 1
    %v207 = vld [vmem:[%s206] ss:$2 sm:$0x3]
    %v209 = vlaneseq
    %v210 = vshrl.u32 %v209, 7
    %v211 = vsub.s32 0, %v210
    %v212 = vrot.slane %v207, %v211
    %v213 = vlaneseq
    %v214 = vshrl.u32 %v213, 7
    %v215 = vsub.s32 1, %v214
    %v216 = vrot.slane %v207, %v215
    %219 = vmatprep.subr.mxu0 %v175
    %220 = vmatpush1.msra.mxu0 %v174
    %221 = vmatprep.subr.mxu0 %v177
    %222 = vmatpush1.msra.mxu0 %v176
    %223 = vmatprep.subr.mxu0 %v179
    %224 = vmatpush1.msra.mxu0 %v178
    %225 = vmatprep.subr.mxu0 %v181
    %226 = vmatpush1.msra.mxu0 %v180
    %227 = vmatprep.subr.mxu0 %v183
    %228 = vmatpush1.msra.mxu0 %v182
    %229 = vmatprep.subr.mxu0 %v185
    %230 = vmatpush1.msra.mxu0 %v184
    %231 = vmatprep.subr.mxu0 %v187
    %232 = vmatpush1.msra.mxu0 %v186
    %233 = vmatprep.subr.mxu0 %v189
    %234 = vmatpush1.msra.mxu0 %v188
    %235 = vmatprep.subr.mxu0 %v191
    %236 = vmatpush1.msra.mxu0 %v190
    %237 = vmatprep.subr.mxu0 %v193
    %238 = vmatpush1.msra.mxu0 %v192
    %239 = vmatprep.subr.mxu0 %v195
    %240 = vmatpush1.msra.mxu0 %v194
    %241 = vmatprep.subr.mxu0 %v197
    %242 = vmatpush1.msra.mxu0 %v196
    %243 = vmatprep.subr.mxu0 %v199
    %244 = vmatpush1.msra.mxu0 %v198
    %245 = vmatprep.subr.mxu0 %v201
    %246 = vmatpush1.msra.mxu0 %v200
    %247 = vmatprep.subr.mxu0 %v203
    %248 = vmatpush1.msra.mxu0 %v202
    %249 = vmatprep.subr.mxu0 %v205
    %250 = vmatpush1.msra.mxu0 %v204
    %251 = vmatprep.subr.mxu0 0.0
    %252 = vmatpush1.msra.mxu0 0.0
    %253 = vmatprep.subr.mxu0 0.0
    %254 = vmatpush1.msra.mxu0 0.0
    %255 = vmatprep.subr.mxu0 0.0
    %256 = vmatpush1.msra.mxu0 0.0
    %257 = vmatprep.subr.mxu0 0.0
    %258 = vmatpush1.msra.mxu0 0.0
    %259 = vmatprep.subr.mxu0 0.0
    %260 = vmatpush1.msra.mxu0 0.0
    %261 = vmatprep.subr.mxu0 0.0
    %262 = vmatpush1.msra.mxu0 0.0
    %263 = vmatprep.subr.mxu0 0.0
    %264 = vmatpush1.msra.mxu0 0.0
    %265 = vmatprep.subr.mxu0 0.0
    %266 = vmatpush1.msra.mxu0 0.0
    %267 = vmatprep.subr.mxu0 0.0
    %268 = vmatpush1.msra.mxu0 0.0
    %269 = vmatprep.subr.mxu0 0.0
    %270 = vmatpush1.msra.mxu0 0.0
    %271 = vmatprep.subr.mxu0 0.0
    %272 = vmatpush1.msra.mxu0 0.0
    %273 = vmatprep.subr.mxu0 0.0
    %274 = vmatpush1.msra.mxu0 0.0
    %275 = vmatprep.subr.mxu0 0.0
    %276 = vmatpush1.msra.mxu0 0.0
    %277 = vmatprep.subr.mxu0 0.0
    %278 = vmatpush1.msra.mxu0 0.0
    %279 = vmatprep.subr.mxu0 0.0
    %280 = vmatpush1.msra.mxu0 0.0
    %281 = vmatprep.subr.mxu0 0.0
    %282 = vmatpush1.msra.mxu0 0.0
    %283 = vmatprep.mubr.f32.mxu0 0.0
    %284 = vmatmul.mubr.f32.gmra.mrb[0].mxu0 %v170
    %v285 = vpop.f32.mrb[0].mxu0
    %v286 = vadd.f32 %v212, %v285
    %v287 = vpop.f32.mrb[0].mxu0
    %v288 = vadd.f32 %v216, %v287
    %289 = vdwg.mxu0
    %v290 = vadd.f32 %v172, %v288
    %v291 = vmax.f32 %v290, 0.0
    %v292 = vld [vmem:[%s5] sm:$0xff]
    %v293 = vld [vmem:[%s5 + $0x8] sm:$0xff]
    %v294 = vld [vmem:[%s5 + $0x10] sm:$0xff]
    %v295 = vld [vmem:[%s5 + $0x18] sm:$0xff]
    %v296 = vld [vmem:[%s5 + $0x20] sm:$0xff]
    %v297 = vld [vmem:[%s5 + $0x28] sm:$0xff]
    %v298 = vld [vmem:[%s5 + $0x30] sm:$0xff]
    %v299 = vld [vmem:[%s5 + $0x38] sm:$0xff]
    %v300 = vld [vmem:[%s5 + $0x40] sm:$0xff]
    %v301 = vld [vmem:[%s5 + $0x48] sm:$0xff]
    %v302 = vld [vmem:[%s5 + $0x50] sm:$0xff]
    %v303 = vld [vmem:[%s5 + $0x58] sm:$0xff]
    %v304 = vld [vmem:[%s5 + $0x60] sm:$0xff]
    %v305 = vld [vmem:[%s5 + $0x68] sm:$0xff]
    %v306 = vld [vmem:[%s5 + $0x70] sm:$0xff]
    %v307 = vld [vmem:[%s5 + $0x78] sm:$0xff]
    %308 = vmatprep.subr.mxu0 0.0
    %309 = vmatpush1.msra.mxu0 %v292
    %310 = vmatprep.subr.mxu0 0.0
    %311 = vmatpush1.msra.mxu0 %v293
    %312 = vmatprep.subr.mxu0 0.0
    %313 = vmatpush1.msra.mxu0 %v294
    %314 = vmatprep.subr.mxu0 0.0
    %315 = vmatpush1.msra.mxu0 %v295
    %316 = vmatprep.subr.mxu0 0.0
    %317 = vmatpush1.msra.mxu0 %v296
    %318 = vmatprep.subr.mxu0 0.0
    %319 = vmatpush1.msra.mxu0 %v297
    %320 = vmatprep.subr.mxu0 0.0
    %321 = vmatpush1.msra.mxu0 %v298
    %322 = vmatprep.subr.mxu0 0.0
    %323 = vmatpush1.msra.mxu0 %v299
    %324 = vmatprep.subr.mxu0 0.0
    %325 = vmatpush1.msra.mxu0 %v300
    %326 = vmatprep.subr.mxu0 0.0
    %327 = vmatpush1.msra.mxu0 %v301
    %328 = vmatprep.subr.mxu0 0.0
    %329 = vmatpush1.msra.mxu0 %v302
    %330 = vmatprep.subr.mxu0 0.0
    %331 = vmatpush1.msra.mxu0 %v303
    %332 = vmatprep.subr.mxu0 0.0
    %333 = vmatpush1.msra.mxu0 %v304
    %334 = vmatprep.subr.mxu0 0.0
    %335 = vmatpush1.msra.mxu0 %v305
    %336 = vmatprep.subr.mxu0 0.0
    %337 = vmatpush1.msra.mxu0 %v306
    %338 = vmatprep.subr.mxu0 0.0
    %339 = vmatpush1.msra.mxu0 %v307
    %340 = vmatprep.subr.mxu0 0.0
    %341 = vmatpush1.msra.mxu0 0.0
    %342 = vmatprep.subr.mxu0 0.0
    %343 = vmatpush1.msra.mxu0 0.0
    %344 = vmatprep.subr.mxu0 0.0
    %345 = vmatpush1.msra.mxu0 0.0
    %346 = vmatprep.subr.mxu0 0.0
    %347 = vmatpush1.msra.mxu0 0.0
    %348 = vmatprep.subr.mxu0 0.0
    %349 = vmatpush1.msra.mxu0 0.0
    %350 = vmatprep.subr.mxu0 0.0
    %351 = vmatpush1.msra.mxu0 0.0
    %352 = vmatprep.subr.mxu0 0.0
    %353 = vmatpush1.msra.mxu0 0.0
    %354 = vmatprep.subr.mxu0 0.0
    %355 = vmatpush1.msra.mxu0 0.0
    %356 = vmatprep.subr.mxu0 0.0
    %357 = vmatpush1.msra.mxu0 0.0
    %358 = vmatprep.subr.mxu0 0.0
    %359 = vmatpush1.msra.mxu0 0.0
    %360 = vmatprep.subr.mxu0 0.0
    %361 = vmatpush1.msra.mxu0 0.0
    %362 = vmatprep.subr.mxu0 0.0
    %363 = vmatpush1.msra.mxu0 0.0
    %364 = vmatprep.subr.mxu0 0.0
    %365 = vmatpush1.msra.mxu0 0.0
    %366 = vmatprep.subr.mxu0 0.0
    %367 = vmatpush1.msra.mxu0 0.0
    %368 = vmatprep.subr.mxu0 0.0
    %369 = vmatpush1.msra.mxu0 0.0
    %370 = vmatprep.subr.mxu0 0.0
    %371 = vmatpush1.msra.mxu0 0.0
    %372 = vmatprep.mubr.f32.mxu0 0.0
    %373 = vmatmul.mubr.f32.gmra.mrb[0].mxu0 %v291
    %v374 = vpop.f32.mrb[0].mxu0
    %v375 = vadd.f32 0.0, %v374
    %v376 = vpop.f32.mrb[0].mxu0
    %377 = vdwg.mxu0
    %vm378 = vcmask 31744
    %v379 = vsel %vm378, %v375, inf
    %380 = vmin.xlane.f32.xlu0 %v379
    %v381 = vpop.xlane.xlu0 %380
    %v382 = vcvt.s32.f32 %v46
    %vm383 = vcmp.eq.f32.partialorder %v375, %v381
    %v384 = vsel %vm383, %v382, 4.0
    %v385 = vsel %vm378, %v384, inf
    %386 = vmin.xlane.f32.xlu0 %v385
    %v387 = vpop.xlane.xlu0 %386
    %vm388 = vcmp.eq.f32.partialorder %v387, 0.0
    %v389 = vsel %vm388, 1, 0
    %v390 = vcvt.s32.f32 %v389
    %v391 = vmul.f32 %v286, %v390
    %vm392 = vcmp.eq.f32.partialorder %v387, 1.0
    %v393 = vsel %vm392, 1, 0
    %v394 = vcvt.s32.f32 %v393
    %v395 = vmul.f32 %v286, %v394
    %397 = vrot.lane.b32.xlu0 %v395, 96
    %v398 = vpop.permute.xlu0 %397
    %v400 = vadd.f32 %v391, %v398
    %vm401 = vcmp.eq.f32.partialorder %v387, 2.0
    %v402 = vsel %vm401, 1, 0
    %v403 = vcvt.s32.f32 %v402
    %v404 = vmul.f32 %v286, %v403
    %406 = vrot.lane.b32.xlu0 %v404, 64
    %v407 = vpop.permute.xlu0 %406
    %v409 = vadd.f32 %v400, %v407
    %vm410 = vcmp.eq.f32.partialorder %v387, 3.0
    %v411 = vsel %vm410, 1, 0
    %v412 = vcvt.s32.f32 %v411
    %v413 = vmul.f32 %v286, %v412
    %415 = vrot.lane.b32.xlu0 %v413, 32
    %v416 = vpop.permute.xlu0 %415
    %v418 = vadd.f32 %v409, %v416
    %vm419 = vcmask 261120
    %420 = vst.msk [vmem:[#allocation5] sm:$0xff] %vm419, %v418
    %v421 = vld [vmem:[%s1] sm:$0xff]
    %422 = vset.pattern.permute.xlu0 0
    %423 = vperm.xlu0 %422, %v421
    %v424 = vpop.permute.xlu0 %423
    %vm425 = vcmp.eq.s32.totalorder %v46, %v424
    %v426 = vsel %vm425, 1, 0
    %v427 = vcvt.s32.f32 %v426
    %v428 = vld [vmem:[%s6] sm:$0xff]
    %v429 = vld [vmem:[%s6 + $0x8] sm:$0xff]
    %v430 = vld [vmem:[%s6 + $0x10] sm:$0xff]
    %v431 = vld [vmem:[%s6 + $0x18] sm:$0xff]
    %v432 = vld [vmem:[%s6 + $0x20] sm:$0xff]
    %v433 = vld [vmem:[%s6 + $0x28] sm:$0xff]
    %v434 = vld [vmem:[%s6 + $0x30] sm:$0xff]
    %v435 = vld [vmem:[%s6 + $0x38] sm:$0xff]
    %vm436 = vcmask 523264
    %v438 = vsel %vm436, %v427, 0
    %440 = vmatprep.subr.mxu0 0.0
    %441 = vmatpush1.msra.mxu0 %v428
    %442 = vmatprep.subr.mxu0 0.0
    %443 = vmatpush1.msra.mxu0 %v429
    %444 = vmatprep.subr.mxu0 0.0
    %445 = vmatpush1.msra.mxu0 %v430
    %446 = vmatprep.subr.mxu0 0.0
    %447 = vmatpush1.msra.mxu0 %v431
    %448 = vmatprep.subr.mxu0 0.0
    %449 = vmatpush1.msra.mxu0 %v432
    %450 = vmatprep.subr.mxu0 0.0
    %451 = vmatpush1.msra.mxu0 %v433
    %452 = vmatprep.subr.mxu0 0.0
    %453 = vmatpush1.msra.mxu0 %v434
    %454 = vmatprep.subr.mxu0 0.0
    %455 = vmatpush1.msra.mxu0 %v435
    %456 = vmatprep.subr.mxu0 0.0
    %457 = vmatpush1.msra.mxu0 0.0
    %458 = vmatprep.subr.mxu0 0.0
    %459 = vmatpush1.msra.mxu0 0.0
    %460 = vmatprep.subr.mxu0 0.0
    %461 = vmatpush1.msra.mxu0 0.0
    %462 = vmatprep.subr.mxu0 0.0
    %463 = vmatpush1.msra.mxu0 0.0
    %464 = vmatprep.subr.mxu0 0.0
    %465 = vmatpush1.msra.mxu0 0.0
    %466 = vmatprep.subr.mxu0 0.0
    %467 = vmatpush1.msra.mxu0 0.0
    %468 = vmatprep.subr.mxu0 0.0
    %469 = vmatpush1.msra.mxu0 0.0
    %470 = vmatprep.subr.mxu0 0.0
    %471 = vmatpush1.msra.mxu0 0.0
    %472 = vmatprep.subr.mxu0 0.0
    %473 = vmatpush1.msra.mxu0 0.0
    %474 = vmatprep.subr.mxu0 0.0
    %475 = vmatpush1.msra.mxu0 0.0
    %476 = vmatprep.subr.mxu0 0.0
    %477 = vmatpush1.msra.mxu0 0.0
    %478 = vmatprep.subr.mxu0 0.0
    %479 = vmatpush1.msra.mxu0 0.0
    %480 = vmatprep.subr.mxu0 0.0
    %481 = vmatpush1.msra.mxu0 0.0
    %482 = vmatprep.subr.mxu0 0.0
    %483 = vmatpush1.msra.mxu0 0.0
    %484 = vmatprep.subr.mxu0 0.0
    %485 = vmatpush1.msra.mxu0 0.0
    %486 = vmatprep.subr.mxu0 0.0
    %487 = vmatpush1.msra.mxu0 0.0
    %488 = vmatprep.subr.mxu0 0.0
    %489 = vmatpush1.msra.mxu0 0.0
    %490 = vmatprep.subr.mxu0 0.0
    %491 = vmatpush1.msra.mxu0 0.0
    %492 = vmatprep.subr.mxu0 0.0
    %493 = vmatpush1.msra.mxu0 0.0
    %494 = vmatprep.subr.mxu0 0.0
    %495 = vmatpush1.msra.mxu0 0.0
    %496 = vmatprep.subr.mxu0 0.0
    %497 = vmatpush1.msra.mxu0 0.0
    %498 = vmatprep.subr.mxu0 0.0
    %499 = vmatpush1.msra.mxu0 0.0
    %500 = vmatprep.subr.mxu0 0.0
    %501 = vmatpush1.msra.mxu0 0.0
    %502 = vmatprep.subr.mxu0 0.0
    %503 = vmatpush1.msra.mxu0 0.0
    %504 = vmatprep.mubr.f32.mxu0 0.0
    %505 = vmatmul.mubr.f32.gmra.mrb[0].mxu0 %v438
    %v506 = vpop.f32.mrb[0].mxu0
    %v507 = vadd.f32 0.0, %v506
    %v508 = vpop.f32.mrb[0].mxu0
    %509 = vdwg.mxu0
    %510 = vst.msk [vmem:[#allocation6] sm:$0xff] %vm419, %v507
    // Predicated region
    $region34: #{cmb_forward_inference_test.1} parent=1 // pred_check
      _
    $region35: #{cmb_forward_inference_test.1} parent=1 // pred_check_branch
      %512 = sbr.rel (0) target = $region37
    $region36: #{cmb_forward_inference_test.1} parent=1 // pred_region
      %s514 = ssub.s32 128, 128
      %515 = vsyncadd [#allocation4], %s514
      %s517 = sshll.u32 [#allocation5], 4
      %s518 = int_to_ptr.vmem [resolvable:$true] %s517
      %520 = dma.vmem_to_hbm [thread:$0]  %s518, 128, %s7, [#allocation4]
    $region37: #{cmb_forward_inference_test.1} parent=1 // pred_fallthru
      _
    // Predicated region
    $region38: #{cmb_forward_inference_test.1} parent=1 // pred_check
      _
    $region39: #{cmb_forward_inference_test.1} parent=1 // pred_check_branch
      %522 = sbr.rel (0) target = $region41
    $region40: #{cmb_forward_inference_test.1} parent=1 // pred_region
      %s524 = ssub.s32 128, 128
      %525 = vsyncadd [#allocation7], %s524
      %s527 = sshll.u32 [#allocation6], 4
      %s528 = int_to_ptr.vmem [resolvable:$true] %s527
      %530 = dma.vmem_to_hbm [thread:$0]  %s528, 128, %s8, [#allocation7]
    $region41: #{cmb_forward_inference_test.1} parent=1 // pred_fallthru
      _
    // Predicated region
    $region42: #{cmb_forward_inference_test.1} parent=1 // pred_check
      _
    $region43: #{cmb_forward_inference_test.1} parent=1 // pred_check_branch
      %532 = sbr.rel (0) target = $region45
    $region44: #{cmb_forward_inference_test.1} parent=1 // pred_region
      %533 = dma.done [#allocation4], 128
    $region45: #{cmb_forward_inference_test.1} parent=1 // pred_fallthru
      _
    // Predicated region
    $region46: #{cmb_forward_inference_test.1} parent=1 // pred_check
      _
    $region47: #{cmb_forward_inference_test.1} parent=1 // pred_check_branch
      %535 = sbr.rel (0) target = $region49
    $region48: #{cmb_forward_inference_test.1} parent=1 // pred_region
      %536 = dma.done [#allocation7], 128
    $region49: #{cmb_forward_inference_test.1} parent=1 // pred_fallthru
      _
    %537 = vsyncpa [#allocation3], 1
    %538 = vsyncpa [#allocation4], 1
    %539 = vsyncpa [#allocation7], 1

</llo_original>
